<compile_context>
chip_gen: v6e
topology: v6e:2x2x1
jax: 0.10.0
libtpu: 0.0.40
codegen_flags: <defaults>
</compile_context>

<pallas_src>
import functools
import math

import jax
import jax.numpy as jnp
from jax.experimental import pallas as pl
from jax.experimental.pallas import tpu as pltpu

_LANES = 128
_SUBLANES = 8


# ---------------------------------------------------------------------------
# Parameter setup (PyTorch __init__ equivalent)
# ---------------------------------------------------------------------------
def build_pe_table(d_model: int, max_len: int = 1024,
                   dtype=jnp.float32) -> jnp.ndarray:
    """Deterministic sin/cos positional-encoding buffer, shape [max_len, 1, d_model].

    Build it in the dtype of the activations so no cast is needed on the hot path.
    """
    position = jnp.arange(max_len, dtype=jnp.float32)[:, None]              # (max_len, 1)
    div_term = jnp.exp(
        jnp.arange(0, d_model, 2, dtype=jnp.float32) * (-math.log(10000.0) / d_model)
    )                                                                        # (d_model/2,)
    ang = position * div_term                                                # (max_len, d_model/2)
    pe = jnp.zeros((max_len, d_model), dtype=jnp.float32)
    pe = pe.at[:, 0::2].set(jnp.sin(ang))
    pe = pe.at[:, 1::2].set(jnp.cos(ang))
    return pe[:, None, :].astype(dtype)                                      # (max_len, 1, d_model)


# ---------------------------------------------------------------------------
# Kernels
# ---------------------------------------------------------------------------
def _pe_add_3d_kernel(x_ref, pe_ref, o_ref):
    # x: (ts, B, D), pe: (ts, 1, D) -> broadcast over the batch (sublane) axis.
    o_ref[...] = (x_ref[...] + pe_ref[...]).astype(o_ref.dtype)


def _pe_add_collapsed_kernel(x_ref, pe_ref, o_ref, *, batch):
    # x: (ts, B*D), pe: (ts, D). Replicate pe over batch entirely in VMEM
    # (lane-axis concat); the add itself is a plain VPU elementwise op on a
    # lane-dense layout (dense, unmasked stores when B*D % 128 == 0).
    pe = pe_ref[...]
    if batch > 1:
        pe = jnp.concatenate([pe] * batch, axis=-1)
    o_ref[...] = (x_ref[...] + pe).astype(o_ref.dtype)


# ---------------------------------------------------------------------------
# Tiling policy
# ---------------------------------------------------------------------------
def _round_up(v: int, m: int) -> int:
    return ((v + m - 1) // m) * m


def _vmem_policy():
    """Returns (per-x-block byte budget, vmem_limit floor, minimum grid steps)."""
    cap = 64 * 1024 * 1024  # conservative default = v7x physical VMEM
    try:
        info = pltpu.get_tpu_info()
        for name in ("vmem_capacity_bytes", "vmem_bytes", "vmem_size_bytes"):
            v = getattr(info, name, None)
            if v:
                cap = int(v)
                break
    except Exception:
        pass
    if cap >= 100 * 1024 * 1024:
        # v5e / v6e: 128 MiB physical VMEM -> big blocks, few grid steps.
        return 14 * 1024 * 1024, 60 * 1024 * 1024, 1
    # v7x-like: 64 MiB physical, 2 TensorCores -> smaller blocks and keep
    # grid >= 4 so each core gets >= 2 blocks of the "parallel" seq axis.
    return 6 * 1024 * 1024, 44 * 1024 * 1024, 4


def _seq_tile(S: int, padded_row_bytes: int, budget_bytes: int, min_steps: int) -> int:
    """Rows of the sequence axis per block (balanced; multiple of 8 when < S)."""
    ts = max(1, budget_bytes // max(1, padded_row_bytes))
    ts = min(ts, S)
    if min_steps > 1 and S >= _SUBLANES * min_steps:
        ts = min(ts, max(_SUBLANES, (S // min_steps) // _SUBLANES * _SUBLANES))
    if ts >= S or S < _SUBLANES:
        return S
    ts = max(_SUBLANES, (ts // _SUBLANES) * _SUBLANES)
    # Balance tiles across the grid so the trailing block isn't a tiny ragged tail.
    nsteps = pl.cdiv(S, ts)
    ts = _round_up(pl.cdiv(S, nsteps), _SUBLANES)
    return ts


def _compiler_params(x_block_bytes: int, pe_block_bytes: int,
                     limit_floor: int, x_buffers: int) -> pltpu.CompilerParams:
    # x_buffers x-blocks + 2 out-blocks + 2 pe-blocks (+ slack), all using the
    # sublane/lane-PADDED block sizes.
    needed = (x_buffers + 2) * x_block_bytes + 2 * pe_block_bytes + (1 << 20)
    return pltpu.CompilerParams(
        dimension_semantics=("parallel",),
        vmem_limit_bytes=int(max(limit_floor, needed)),
    )


def _x_block_spec(block_shape, index_map, n_buffers):
    # Deeper pipelining for the x input when blocks are small (v7x path).
    if n_buffers > 2 and hasattr(pl, "Buffered"):
        try:
            return pl.BlockSpec(block_shape, index_map,
                                pipeline_mode=pl.Buffered(n_buffers))
        except TypeError:
            pass
    return pl.BlockSpec(block_shape, index_map)


def _cost_estimate(S, B, D, itemsize):
    # Mem-bound elementwise add: read x + pe, write out.
    return pl.CostEstimate(
        flops=S * B * D,
        transcendentals=0,
        bytes_accessed=(2 * S * B * D + S * D) * itemsize,
    )


# ---------------------------------------------------------------------------
# Wrappers
# ---------------------------------------------------------------------------
def _forward_collapsed(x, pe, donate_x, budget, limit_floor, min_steps):
    # B < 8: collapse batch into the lane axis -> (S, B*D) lane-dense layout.
    S, B, D = x.shape
    max_len = pe.shape[0]
    BD = B * D
    itemsize = jnp.dtype(x.dtype).itemsize

    x2 = x.reshape(S, BD)             # free for contiguous row-major x
    pe2 = pe.reshape(max_len, D)      # free: drops the singleton batch axis

    x_row = _round_up(BD, _LANES) * itemsize      # padded VMEM bytes per seq row
    pe_row = _round_up(D, _LANES) * itemsize
    ts = _seq_tile(S, 2 * x_row + pe_row, budget, min_steps)
    if ts == S and S % _SUBLANES != 0 and S != max_len:
        # Rare single awkward-sized block: slice pe (no cast, tiny) so its
        # leading dim equals the block and is exempt from the 8-row rule.
        pe2 = pe2[:S]

    grid = pl.cdiv(S, ts)
    ts_pad = _round_up(ts, _SUBLANES)
    x_blk = ts_pad * x_row
    pe_blk = ts_pad * pe_row
    x_bufs = 3 if (min_steps > 1 and grid >= 3) else 2

    out2 = pl.pallas_call(
        functools.partial(_pe_add_collapsed_kernel, batch=B),
        out_shape=jax.ShapeDtypeStruct((S, BD), x.dtype),
        grid=(grid,),
        in_specs=[
            _x_block_spec((ts, BD), lambda i: (i, 0), x_bufs),
            pl.BlockSpec((ts, D), lambda i: (i, 0)),
        ],
        out_specs=pl.BlockSpec((ts, BD), lambda i: (i, 0)),
        compiler_params=_compiler_params(x_blk, pe_blk, limit_floor, x_bufs),
        cost_estimate=_cost_estimate(S, B, D, itemsize),
        input_output_aliases=({0: 0} if donate_x else {}),
    )(x2, pe2)
    return out2.reshape(S, B, D)


def _forward_3d(x, pe, donate_x, budget, limit_floor, min_steps):
    # B >= 8: natural (ts, B, D) layout (dense sublanes when B % 8 == 0).
    S, B, D = x.shape
    itemsize = jnp.dtype(x.dtype).itemsize
    B_pad = _round_up(B, _SUBLANES)
    D_pad = _round_up(D, _LANES)

    x_row = B_pad * D_pad * itemsize              # padded VMEM bytes per seq row
    pe_row = _SUBLANES * D_pad * itemsize         # (1, D) slice pads to 8 sublanes
    ts = _seq_tile(S, 2 * x_row + pe_row, budget, min_steps)

    grid = pl.cdiv(S, ts)
    x_blk = ts * x_row
    pe_blk = ts * pe_row
    x_bufs = 3 if (min_steps > 1 and grid >= 3) else 2

    return pl.pallas_call(
        _pe_add_3d_kernel,
        out_shape=jax.ShapeDtypeStruct((S, B, D), x.dtype),
        grid=(grid,),
        in_specs=[
            _x_block_spec((ts, B, D), lambda i: (i, 0, 0), x_bufs),
            pl.BlockSpec((ts, 1, D), lambda i: (i, 0, 0)),
        ],
        out_specs=pl.BlockSpec((ts, B, D), lambda i: (i, 0, 0)),
        compiler_params=_compiler_params(x_blk, pe_blk, limit_floor, x_bufs),
        cost_estimate=_cost_estimate(S, B, D, itemsize),
        input_output_aliases=({0: 0} if donate_x else {}),
    )(x, pe)


def positional_encoding_forward(x: jnp.ndarray, pe: jnp.ndarray,
                                donate_x: bool = False,
                                _block_budget_bytes: int | None = None) -> jnp.ndarray:
    """x: [seq_len, batch, d_model]; pe: [max_len, 1, d_model] buffer.

    Pass pe built in x.dtype (build_pe_table(..., dtype=x.dtype)) so no cast
    happens on the hot path. `donate_x=True` only aliases the output onto the
    kernel's x operand (saves the output allocation; HBM traffic unchanged)
    and is only a true in-place update if the caller no longer uses x.
    """
    S, B, D = x.shape
    max_len = pe.shape[0]
    if S > max_len:
        raise ValueError(f"seq_len {S} exceeds max_len {max_len}")
    if pe.dtype != x.dtype:
        # Fallback only; prefer building pe in x.dtype at init.
        pe = pe.astype(x.dtype)

    budget, limit_floor, min_steps = _vmem_policy()
    if _block_budget_bytes is not None:   # test hook: force small tiles
        budget = int(_block_budget_bytes)

    if B < _SUBLANES:
        return _forward_collapsed(x, pe, donate_x, budget, limit_floor, min_steps)
    return _forward_3d(x, pe, donate_x, budget, limit_floor, min_steps)


# ---------------------------------------------------------------------------
# Demo / correctness check
# ---------------------------------------------------------------------------
if __name__ == "__main__":
    max_len = 64

    # 1) Toy spec shape (small d_model, B < 8) -> collapsed lane path.
    S, B, D = 8, 2, 32
    x = jax.random.normal(jax.random.PRNGKey(0), (S, B, D), dtype=jnp.float32)
    pe = build_pe_table(D, max_len, dtype=x.dtype)
    ref = x + pe[:S]                              # pure-JAX reference (== PyTorch forward)
    out = jax.block_until_ready(positional_encoding_forward(x, pe))
    assert out.shape == (S, B, D)
    assert jnp.allclose(out, ref, atol=1e-6), "mismatch (collapsed path)"

    # 2) Transformer-typical width (D % 128 == 0), B < 8 -> lane-dense collapsed path.
    S2, B2, D2 = 16, 4, 256
    x2 = jax.random.normal(jax.random.PRNGKey(1), (S2, B2, D2), dtype=jnp.float32)
    pe2 = build_pe_table(D2, max_len, dtype=x2.dtype)
    out2 = jax.block_until_ready(positional_encoding_forward(x2, pe2))
    assert jnp.allclose(out2, x2 + pe2[:S2], atol=1e-6), "mismatch (wide collapsed path)"

    # 3) B >= 8 (natural 3-D layout); tiny budget forces a multi-step grid + ragged tail.
    S3, B3, D3 = 36, 8, 128
    x3 = jax.random.normal(jax.random.PRNGKey(2), (S3, B3, D3), dtype=jnp.float32)
    pe3 = build_pe_table(D3, max_len, dtype=x3.dtype)
    out3 = jax.block_until_ready(
        positional_encoding_forward(x3, pe3, _block_budget_bytes=64 * 1024))
    assert jnp.allclose(out3, x3 + pe3[:S3], atol=1e-6), "mismatch (3-D path)"

    # 4) Collapsed path with a multi-step grid + ragged trailing block.
    S4, B4, D4 = 36, 2, 32
    x4 = jax.random.normal(jax.random.PRNGKey(3), (S4, B4, D4), dtype=jnp.float32)
    pe4 = build_pe_table(D4, max_len, dtype=x4.dtype)
    out4 = jax.block_until_ready(
        positional_encoding_forward(x4, pe4, _block_budget_bytes=4 * 1024))
    assert jnp.allclose(out4, x4 + pe4[:S4], atol=1e-6), "mismatch (tiled collapsed path)"

    # 5) Awkward tiny seq_len (< 8, not a multiple of 8) -> single exempt block.
    S5, B5, D5 = 4, 2, 32
    x5 = jax.random.normal(jax.random.PRNGKey(4), (S5, B5, D5), dtype=jnp.float32)
    pe5 = build_pe_table(D5, max_len, dtype=x5.dtype)
    out5 = jax.block_until_ready(positional_encoding_forward(x5, pe5))
    assert jnp.allclose(out5, x5 + pe5[:S5], atol=1e-6), "mismatch (tiny-S path)"

    print("KERNEL_OK")
</pallas_src>

<mosaic_0001>
module attributes {stable_mosaic.version = 11 : i64} {
  func.func @_pe_add_collapsed_kernel(%arg0: i32, %arg1: memref<8x64xf32, #tpu.memory_space<vmem>>, %arg2: memref<8x32xf32, #tpu.memory_space<vmem>>, %arg3: memref<8x64xf32, #tpu.memory_space<vmem>>) attributes {dimension_semantics = [#tpu.dimension_semantics<parallel>], iteration_bounds = array<i64: 1>, scalar_prefetch = 0 : i64, scratch_operands = 0 : i64, tpu.core_type = #tpu.core_type<tc>, window_params = [{transform_indices = @transform_0, window_bounds = array<i64: 8, 64>}, {transform_indices = @transform_1, window_bounds = array<i64: 8, 32>}, {transform_indices = @transform_2, window_bounds = array<i64: 8, 64>}]} {
    %c0 = arith.constant 0 : index
    %c0_0 = arith.constant 0 : index
    %0 = vector.load %arg2[%c0, %c0_0] : memref<8x32xf32, #tpu.memory_space<vmem>>, vector<8x32xf32>
    %1 = tpu.concatenate %0, %0 in 1 : vector<8x32xf32>, vector<8x32xf32> -> vector<8x64xf32>
    %c0_1 = arith.constant 0 : index
    %c0_2 = arith.constant 0 : index
    %2 = vector.load %arg1[%c0_1, %c0_2] : memref<8x64xf32, #tpu.memory_space<vmem>>, vector<8x64xf32>
    %3 = arith.addf %2, %1 : vector<8x64xf32>
    %c0_3 = arith.constant 0 : index
    %c0_4 = arith.constant 0 : index
    %4 = vector.load %arg3[%c0_3, %c0_4] : memref<8x64xf32, #tpu.memory_space<vmem>>, vector<8x64xf32>
    tpu.vector_store %arg3[%c0_3, %c0_4], %3 {strides = array<i32>} : memref<8x64xf32, #tpu.memory_space<vmem>>, vector<8x64xf32>,
    return
  }
  func.func @transform_0(%arg0: i32) -> (i32, i32) {
    %c0_i32 = arith.constant 0 : i32
    %c0_i32_0 = arith.constant 0 : i32
    return %arg0, %c0_i32 : i32, i32
  }
  func.func @transform_1(%arg0: i32) -> (i32, i32) {
    %c0_i32 = arith.constant 0 : i32
    %c0_i32_0 = arith.constant 0 : i32
    return %arg0, %c0_i32 : i32, i32
  }
  func.func @transform_2(%arg0: i32) -> (i32, i32) {
    %c0_i32 = arith.constant 0 : i32
    %c0_i32_0 = arith.constant 0 : i32
    return %arg0, %c0_i32 : i32, i32
  }
}

</mosaic_0001>

<llo_original>
// kernel: tpu_custom_call.1
$region0: #{tpu_custom_call.1}
  #allocation0 [shape = 'u32[]', space=smem, size = 0x4, offset = 0x4, fixed_abs, tag = 'smem constant byte address 0x4 - core index']
  #allocation1 [shape = 'u32[144,128]{1,0:T(1,128)}', space=vmem, size = 0x12000, scoped, tag = 'internal scratch']
  %s0 = inlined_call_operand.vmem [shape: f32[8,64], index: 0, kind: input, shape index: {}]
  %s1 = inlined_call_operand.vmem [shape: f32[64,32], index: 1, kind: input, shape index: {}]
  %s2 = inlined_call_operand.hbm [shape: f32[8,64], index: 2, kind: output, shape index: {}]
  %s3 = sld [smem:[#allocation0]]
  $region18: #{tpu_custom_call.1} parent=0
    _
  %s5 = ssub.s32 1, %s3
  %s6 = scalar_select 0, %s5, %s3
  $region1: #{tpu_custom_call.1} parent=0
    #allocation2 [shape = 'u8[4096]{0}', space=vmem, size = 0x1000, scoped, tag = 'output window, operand 0, single buffered']
    #allocation3 [shape = 's32[1]{0}', space=sflag, size = 0x4, scoped, tag = 'scoped memory for tpu_custom_call.1']
    %7 = vsyncpa [#allocation3], 0
    // Predicated region
    $region2: #{tpu_custom_call.1} parent=1 // pred_check
      _
    $region3: #{tpu_custom_call.1} parent=1 // pred_check_branch
      %9 = sbr.rel (0) target = $region5
    $region4: #{tpu_custom_call.1} parent=1 // pred_region
      _
    $region5: #{tpu_custom_call.1} parent=1 // pred_fallthru
      _
    // Predicated region
    $region6: #{tpu_custom_call.1} parent=1 // pred_check
      _
    $region7: #{tpu_custom_call.1} parent=1 // pred_check_branch
      %11 = sbr.rel (0) target = $region9
    $region8: #{tpu_custom_call.1} parent=1 // pred_region
      _
    $region9: #{tpu_custom_call.1} parent=1 // pred_fallthru
      _
    %v12 = vld [vmem:[%s1] sm:$0xff]
    %14 = vrot.lane.b32.xlu0 %v12, 32
    %v15 = vpop.permute.xlu0 %14
    %vm17 = vcmask 261120
    %v18 = vsel %vm17, %v12, %v15
    %v19 = vld [vmem:[%s0] sm:$0xff]
    %v20 = vadd.f32 %v19, %v18
    %vm21 = vcmask 523264
    %22 = vst.msk [vmem:[#allocation2] sm:$0xff] %vm21, %v20
    // Predicated region
    $region10: #{tpu_custom_call.1} parent=1 // pred_check
      _
    $region11: #{tpu_custom_call.1} parent=1 // pred_check_branch
      %24 = sbr.rel (0) target = $region13
    $region12: #{tpu_custom_call.1} parent=1 // pred_region
      %s26 = ssub.s32 128, 128
      %27 = vsyncadd [#allocation3], %s26
      %s29 = sshll.u32 [#allocation2], 4
      %s30 = int_to_ptr.vmem [resolvable:$true] %s29
      %32 = dma.vmem_to_hbm [thread:$0]  %s30, 128, %s2, [#allocation3]
    $region13: #{tpu_custom_call.1} parent=1 // pred_fallthru
      _
    // Predicated region
    $region14: #{tpu_custom_call.1} parent=1 // pred_check
      _
    $region15: #{tpu_custom_call.1} parent=1 // pred_check_branch
      %34 = sbr.rel (0) target = $region17
    $region16: #{tpu_custom_call.1} parent=1 // pred_region
      %35 = dma.done [#allocation3], 128
    $region17: #{tpu_custom_call.1} parent=1 // pred_fallthru
      _
    %36 = vsyncpa [#allocation3], 1

</llo_original>
